<compile_context>
chip_gen: v7x
topology: tpu7x:2x2x1
jax: 0.10.0
libtpu: 0.0.40
codegen_flags: <defaults>
</compile_context>

<pallas_src>
import math
import numpy as np
import jax
import jax.numpy as jnp
from jax.experimental import pallas as pl
from jax.experimental.pallas import tpu as pltpu


def build_scaler() -> np.ndarray:
    """Deterministically rebuild the scaler vector from SeerScalerV1.__init__."""
    player_scaler = [1.0 / 4096.0, 1.0 / 5120.0, 1.0 / 2048.0, 1.0 / math.pi,
                     1.0 / math.pi, 1.0 / math.pi, 1.0 / 2300.0, 1.0 / 2300.0,
                     1.0 / 2300.0, 1.0 / 5.5, 1.0 / 5.5, 1.0 / 5.5, 1.0 / 3.0,
                     1.0 / 100.0, 1.0, 1.0]
    ball_scaler = [1.0 / 4096.0, 1.0 / 5120.0, 1.0 / 2048.0, 1.0 / 6000.0,
                   1.0 / 6000.0, 1.0 / 6000.0, 1.0 / 6.0, 1.0 / 6.0, 1.0 / 6.0]
    boost_timer_scaler = [1.0 / 4.0, 1.0 / 4.0, 1.0 / 4.0, 1.0 / 10.0, 1.0 / 10.0,
                          1.0 / 4.0, 1.0 / 4.0, 1.0 / 4.0, 1.0 / 4.0, 1.0 / 4.0,
                          1.0 / 4.0, 1.0 / 4.0, 1.0 / 4.0, 1.0 / 4.0, 1.0 / 4.0,
                          1.0 / 10.0, 1.0 / 4.0, 1.0 / 4.0, 1.0 / 10.0, 1.0 / 4.0,
                          1.0 / 4.0, 1.0 / 4.0, 1.0 / 4.0, 1.0 / 4.0, 1.0 / 4.0,
                          1.0 / 4.0, 1.0 / 4.0, 1.0 / 4.0, 1.0 / 4.0, 1.0 / 10.0,
                          1.0 / 10.0, 1.0 / 4.0, 1.0 / 4.0, 1.0 / 4.0]
    pos_diff = [1.0 / (4096.0 * 2.0), 1.0 / (5120.0 * 2.0), 1.0 / 2048.0,
                1.0 / 13272.55]
    vel_diff_player = [1.0 / (2300.0 * 2.0), 1.0 / (2300.0 * 2.0),
                       1.0 / (2300.0 * 2.0), 1.0 / 2300.0]
    vel_diff_ball = [1.0 / (2300.0 + 6000.0), 1.0 / (2300.0 + 6000.0),
                     1.0 / (2300.0 + 6000.0), 1.0 / 6000.0]
    boost_active = [1.0 for _ in range(34)]
    player_alive = [1.0]
    player_speed = [1.0 / 2300, 1.0]
    ball_speed = [1.0 / 6000.0]
    prev_action = [1.0 for _ in range(19)]
    scaler = np.concatenate(
        [player_scaler, player_scaler, boost_timer_scaler, ball_scaler,
         pos_diff, vel_diff_player, pos_diff, vel_diff_ball, pos_diff,
         vel_diff_ball, boost_active, player_alive, player_alive,
         player_speed, player_speed, ball_speed, prev_action],
        dtype=np.float32)
    assert np.all(scaler <= 1.0)
    return scaler  # shape (159,)


def _scaler_kernel(x_ref, s_ref, o_ref):
    # Single fused elementwise VPU multiply: (TM, F) * (1, F) broadcast.
    o_ref[...] = x_ref[...] * s_ref[...]


# Max rows per block.  8192 * 159 * 4 B ~= 5.2 MiB per buffer; with
# (in + out) * 2 double buffers this is ~21 MiB, under the 32 MiB default
# scoped VMEM limit on v5e / v6e / v7x.
_MAX_ROW_TILE = 8192


def _choose_row_tile(B: int) -> int:
    if B <= _MAX_ROW_TILE:
        # Full-extent row block is always legal (even if B % 8 != 0); with a
        # single grid step there is nothing to pipeline anyway.
        return B
    # Large batch: big row tiles (multiple of 8) for double-buffered DMA.
    return _MAX_ROW_TILE


def seer_scaler_forward(x: jax.Array, scaler: jax.Array,
                        row_tile: int | None = None) -> jax.Array:
    """x: (B, F) float32; scaler: (F,) float32. Returns x * scaler."""
    B, F = x.shape
    assert scaler.shape == (F,)
    s2d = scaler.reshape(1, F).astype(x.dtype)

    tm = _choose_row_tile(B) if row_tile is None else row_tile
    grid = (pl.cdiv(B, tm),)

    cost = pl.CostEstimate(
        flops=B * F,
        transcendentals=0,
        bytes_accessed=2 * B * F * x.dtype.itemsize + F * x.dtype.itemsize,
    )

    return pl.pallas_call(
        _scaler_kernel,
        out_shape=jax.ShapeDtypeStruct((B, F), x.dtype),
        grid=grid,
        in_specs=[
            # Batch-tiled input stream.
            pl.BlockSpec((tm, F), lambda i: (i, 0)),
            # Scaler row: constant block index -> DMA'd once, stays resident.
            pl.BlockSpec((1, F), lambda i: (0, 0)),
        ],
        out_specs=pl.BlockSpec((tm, F), lambda i: (i, 0)),
        compiler_params=pltpu.CompilerParams(
            dimension_semantics=("parallel",)),
        cost_estimate=cost,
    )(x, s2d)


if __name__ == "__main__":
    scaler_np = build_scaler()
    F = scaler_np.shape[0]  # 159
    scaler = jnp.asarray(scaler_np)

    key = jax.random.PRNGKey(0)

    # --- Small-shape test (single full block path), matches module usage. ---
    B = 4
    x = jax.random.uniform(key, (B, F), dtype=jnp.float32,
                           minval=-100.0, maxval=100.0)
    out = seer_scaler_forward(x, scaler)
    out = jax.block_until_ready(out)
    ref = x * scaler[None, :]
    np.testing.assert_allclose(np.asarray(out), np.asarray(ref),
                               rtol=1e-6, atol=1e-6)

    # --- Multi-block test: exercises the batch-tiled pipeline (grid > 1,
    #     partial last block) with a small forced row tile. ---
    B2 = 20
    x2 = jax.random.uniform(jax.random.PRNGKey(1), (B2, F), dtype=jnp.float32,
                            minval=-100.0, maxval=100.0)
    out2 = seer_scaler_forward(x2, scaler, row_tile=8)
    out2 = jax.block_until_ready(out2)
    ref2 = x2 * scaler[None, :]
    np.testing.assert_allclose(np.asarray(out2), np.asarray(ref2),
                               rtol=1e-6, atol=1e-6)

    print("KERNEL_OK")
</pallas_src>

<mosaic_0001>
module attributes {stable_mosaic.version = 11 : i64} {
  func.func @_scaler_kernel(%arg0: i32, %arg1: memref<4x159xf32, #tpu.memory_space<vmem>>, %arg2: memref<1x159xf32, #tpu.memory_space<vmem>>, %arg3: memref<4x159xf32, #tpu.memory_space<vmem>>) attributes {dimension_semantics = [#tpu.dimension_semantics<parallel>], iteration_bounds = array<i64: 1>, scalar_prefetch = 0 : i64, scratch_operands = 0 : i64, tpu.core_type = #tpu.core_type<tc>, window_params = [{transform_indices = @transform_0, window_bounds = array<i64: 4, 159>}, {pipeline_mode = #tpu.pipeline_mode<synchronous>, transform_indices = @transform_1, window_bounds = array<i64: 1, 159>}, {transform_indices = @transform_2, window_bounds = array<i64: 4, 159>}]} {
    %c0 = arith.constant 0 : index
    %c0_0 = arith.constant 0 : index
    %0 = vector.load %arg1[%c0, %c0_0] : memref<4x159xf32, #tpu.memory_space<vmem>>, vector<4x159xf32>
    %c0_1 = arith.constant 0 : index
    %c0_2 = arith.constant 0 : index
    %1 = vector.load %arg2[%c0_1, %c0_2] : memref<1x159xf32, #tpu.memory_space<vmem>>, vector<1x159xf32>
    %2 = vector.broadcast %1 : vector<1x159xf32> to vector<4x159xf32>
    %3 = arith.mulf %0, %2 : vector<4x159xf32>
    %c0_3 = arith.constant 0 : index
    %c0_4 = arith.constant 0 : index
    %4 = vector.load %arg3[%c0_3, %c0_4] : memref<4x159xf32, #tpu.memory_space<vmem>>, vector<4x159xf32>
    tpu.vector_store %arg3[%c0_3, %c0_4], %3 {strides = array<i32>} : memref<4x159xf32, #tpu.memory_space<vmem>>, vector<4x159xf32>,
    return
  }
  func.func @transform_0(%arg0: i32) -> (i32, i32) {
    %c0_i32 = arith.constant 0 : i32
    %c0_i32_0 = arith.constant 0 : i32
    return %arg0, %c0_i32 : i32, i32
  }
  func.func @transform_1(%arg0: i32) -> (i32, i32) {
    %c0_i32 = arith.constant 0 : i32
    %c0_i32_0 = arith.constant 0 : i32
    %c0_i32_1 = arith.constant 0 : i32
    return %c0_i32, %c0_i32_0 : i32, i32
  }
  func.func @transform_2(%arg0: i32) -> (i32, i32) {
    %c0_i32 = arith.constant 0 : i32
    %c0_i32_0 = arith.constant 0 : i32
    return %arg0, %c0_i32 : i32, i32
  }
}

</mosaic_0001>

<llo_original>
// kernel: tpu_custom_call.1
$region0: #{tpu_custom_call.1}
  #allocation0 [shape = 'u32[]', space=smem, size = 0x4, offset = 0x4, fixed_abs, tag = 'smem constant byte address 0x4 - core index']
  #allocation1 [shape = 'u32[144,128]{1,0:T(1,128)}', space=vmem, size = 0x12000, scoped, tag = 'internal scratch']
  %s0 = inlined_call_operand.hbm [shape: f32[4,159], index: 0, kind: input, shape index: {}]
  %s1 = inlined_call_operand.vmem [shape: f32[1,159], index: 1, kind: input, shape index: {}]
  %s2 = inlined_call_operand.hbm [shape: f32[4,159], index: 2, kind: output, shape index: {}]
  %s3 = sld [smem:[#allocation0]]
  $region22: #{tpu_custom_call.1} parent=0
    _
  %s5 = ssub.s32 1, %s3
  %s6 = scalar_select 0, %s5, %s3
  $region1: #{tpu_custom_call.1} parent=0
    #allocation2 [shape = 'u8[4096]{0}', space=vmem, size = 0x1000, scoped, tag = 'input window, operand 0, single buffered']
    #allocation3 [shape = 's32[1]{0}', space=sflag, size = 0x4, scoped, tag = 'scoped memory for tpu_custom_call.1']
    #allocation4 [shape = 's32[1]{0}', space=sflag, size = 0x4, scoped, tag = 'scoped memory for tpu_custom_call.1']
    #allocation5 [shape = 'u8[4096]{0}', space=vmem, size = 0x1000, scoped, tag = 'output window, operand 0, single buffered']
    %7 = vsyncpa [#allocation3], 0
    %8 = vsyncpa [#allocation4], 0
    // Predicated region
    $region2: #{tpu_custom_call.1} parent=1 // pred_check
      _
    $region3: #{tpu_custom_call.1} parent=1 // pred_check_branch
      %10 = sbr.rel (0) target = $region5
    $region4: #{tpu_custom_call.1} parent=1 // pred_region
      %s12 = ssub.s32 128, 128
      %13 = vsyncadd [#allocation3], %s12
      %s15 = sshll.u32 [#allocation2], 4
      %s16 = int_to_ptr.vmem [resolvable:$true] %s15
      %18 = dma.hbm_to_vmem [thread:$0]  %s0, 128, %s16, [#allocation3]
    $region5: #{tpu_custom_call.1} parent=1 // pred_fallthru
      _
    // Predicated region
    $region6: #{tpu_custom_call.1} parent=1 // pred_check
      _
    $region7: #{tpu_custom_call.1} parent=1 // pred_check_branch
      %20 = sbr.rel (0) target = $region9
    $region8: #{tpu_custom_call.1} parent=1 // pred_region
      _
    $region9: #{tpu_custom_call.1} parent=1 // pred_fallthru
      _
    // Predicated region
    $region10: #{tpu_custom_call.1} parent=1 // pred_check
      _
    $region11: #{tpu_custom_call.1} parent=1 // pred_check_branch
      %22 = sbr.rel (0) target = $region13
    $region12: #{tpu_custom_call.1} parent=1 // pred_region
      %23 = dma.done [#allocation3], 128
    $region13: #{tpu_custom_call.1} parent=1 // pred_fallthru
      _
    %v24 = vld [vmem:[#allocation2] sm:$0xff]
    %v25 = vld [vmem:[%s1] sm:$0x3]
    %v27 = vlaneseq
    %v28 = vshrl.u32 %v27, 7
    %v29 = vsub.s32 0, %v28
    %v30 = vrot.slane %v25, %v29
    %v31 = vlaneseq
    %v32 = vshrl.u32 %v31, 7
    %v33 = vsub.s32 1, %v32
    %v34 = vrot.slane %v25, %v33
    %v35 = vcombine.low %v30, %v34
    %v37 = vmul.f32 %v24, %v35
    %vm38 = vcmask 1043456
    %vm39 = vcmask 252932
    %vm40 = vmor %vm39, %vm38
    %41 = vst.msk [vmem:[#allocation5] sm:$0xff] %vm40, %v37
    // Predicated region
    $region14: #{tpu_custom_call.1} parent=1 // pred_check
      _
    $region15: #{tpu_custom_call.1} parent=1 // pred_check_branch
      %43 = sbr.rel (0) target = $region17
    $region16: #{tpu_custom_call.1} parent=1 // pred_region
      %s45 = ssub.s32 128, 128
      %46 = vsyncadd [#allocation4], %s45
      %s48 = sshll.u32 [#allocation5], 4
      %s49 = int_to_ptr.vmem [resolvable:$true] %s48
      %51 = dma.vmem_to_hbm [thread:$0]  %s49, 128, %s2, [#allocation4]
    $region17: #{tpu_custom_call.1} parent=1 // pred_fallthru
      _
    // Predicated region
    $region18: #{tpu_custom_call.1} parent=1 // pred_check
      _
    $region19: #{tpu_custom_call.1} parent=1 // pred_check_branch
      %53 = sbr.rel (0) target = $region21
    $region20: #{tpu_custom_call.1} parent=1 // pred_region
      %54 = dma.done [#allocation4], 128
    $region21: #{tpu_custom_call.1} parent=1 // pred_fallthru
      _
    %55 = vsyncpa [#allocation3], 1
    %56 = vsyncpa [#allocation4], 1

</llo_original>
